<compile_context>
chip_gen: v7x
topology: tpu7x:2x2x1
jax: 0.10.0
libtpu: 0.0.40
codegen_flags: <defaults>
</compile_context>

<pallas_src>
import functools
from typing import NamedTuple

import numpy as np
import jax
import jax.numpy as jnp
from jax.experimental import pallas as pl
from jax.experimental.pallas import tpu as pltpu


_MiB = 1024 * 1024
_DEFAULT_VMEM_BUDGET = 48 * _MiB   # fits v7x's 64 MiB VMEM with headroom; well under v5e/v6e 128 MiB
_FEATURE_TILE = 512                # K / N tile when the feature dim is large (lane/MXU aligned)
_FEATURE_FULL_MAX = 1024           # feature dims up to this stay a single full-dim block

_HAS_BUFFERED = hasattr(pl, "Buffered")


def _round_up(v, m):
    return (v + m - 1) // m * m


def _feature_tile(dim):
    """Tile for a feature (K or N) dim: full dim if small, else 512 (multiple of 128/256)."""
    return dim if dim <= _FEATURE_FULL_MAX else _FEATURE_TILE


# ----------------------------- Pallas kernels --------------------------------

def _fc_kernel_fused(use_relu, x_ref, wt_ref, b_ref, o_ref):
    """Single-K-block path: no accumulator scratch needed."""
    x = x_ref[...]                                   # (bm, bk), incoming dtype
    if x.dtype != wt_ref.dtype:
        x = x.astype(wt_ref.dtype)                   # per-tile cast of x only; W^T already in compute dtype
    out = jnp.dot(x, wt_ref[...], preferred_element_type=jnp.float32)   # MXU, fp32 acc
    out = out + b_ref[...]                                               # fp32 bias add
    if use_relu:
        out = jnp.maximum(out, 0.0)
    o_ref[...] = out.astype(o_ref.dtype)                                 # lane-dense store


def _fc_kernel_acc(use_relu, x_ref, wt_ref, b_ref, o_ref, acc_ref):
    """K-tiled path: fp32 VMEM accumulator, init at k==0, finalize at the last k."""
    k = pl.program_id(2)

    @pl.when(k == 0)
    def _init():
        acc_ref[...] = jnp.zeros_like(acc_ref)

    x = x_ref[...]
    if x.dtype != wt_ref.dtype:
        x = x.astype(wt_ref.dtype)
    acc_ref[...] += jnp.dot(x, wt_ref[...], preferred_element_type=jnp.float32)

    @pl.when(k == pl.num_programs(2) - 1)
    def _finalize():
        out = acc_ref[...] + b_ref[...]
        if use_relu:
            out = jnp.maximum(out, 0.0)
        o_ref[...] = out.astype(o_ref.dtype)


# ----------------------------- parameters ------------------------------------

class FCParams(NamedTuple):
    wt: jax.Array        # (K_padded, N_padded): pre-transposed (in, out), compute dtype
    bias: jax.Array      # (1, N_padded) fp32
    in_features: int
    out_features: int


def prepare_params(weight, bias, *, use_bf16=True):
    """One-time transform of nn.Linear parameters for the kernel.

    weight: (out_features, in_features) — PyTorch layout.
    Transposes to (in, out) (lane-dense output), casts to the MXU compute dtype and
    zero-pads K/N up to the feature tile ONCE, so none of this is redone per call.
    `use_bf16` is the precision knob: bf16 operands + fp32 accumulation (rel. error
    grows roughly with sqrt(in_features)); set False for exact fp32 parity.
    """
    out_features, in_features = weight.shape
    compute_dtype = jnp.bfloat16 if use_bf16 else jnp.float32
    wt = jnp.asarray(weight).T.astype(compute_dtype)
    b = jnp.asarray(bias, jnp.float32).reshape(1, out_features)

    pad_k = _round_up(in_features, _feature_tile(in_features)) - in_features
    pad_n = _round_up(out_features, _feature_tile(out_features)) - out_features
    if pad_k or pad_n:
        wt = jnp.pad(wt, ((0, pad_k), (0, pad_n)))   # zero rows/cols are exact no-ops
        b = jnp.pad(b, ((0, 0), (0, pad_n)))
    return FCParams(wt=wt, bias=b, in_features=in_features, out_features=out_features)


def init_params(key, in_features, out_features):
    """Matches the PyTorch module: xavier_uniform_ weight, zero bias (PyTorch layout)."""
    a = float(np.sqrt(6.0 / (in_features + out_features)))
    weight = jax.random.uniform(key, (out_features, in_features), jnp.float32,
                                minval=-a, maxval=a)
    bias = jnp.zeros((out_features,), jnp.float32)
    return weight, bias


# ----------------------------- tile selection ---------------------------------

def _pick_block_m(m, bk, bn, x_bytes, w_bytes, out_bytes, vmem_budget):
    """Batch tile: fill the MXU / amortize per-step overhead, bounded by a VMEM budget.

    Small batches stay a single grid step (splitting a small batch only adds ~0.35us
    pipeline steps for nothing on 1-TC chips); larger batches use 512/256-row tiles
    (v6e/v7x MXU is 256x256) and the batch is padded up to the tile rather than
    degenerating into tiny blocks when it does not divide evenly.
    """
    m8 = _round_up(max(m, 1), 8)
    candidates = [512, 256, 128, 64, 32, 16, 8]
    if m8 <= candidates[0]:
        candidates = [m8] + [c for c in candidates if c < m8]
    need = 0
    for bm in candidates:
        need = (2 * bm * bk * x_bytes      # x tile (double-buffered)
                + 2 * bk * bn * w_bytes    # W^T tile (<= 2 buffers)
                + 2 * bn * 4               # bias
                + 2 * bm * bn * out_bytes  # output tile (double-buffered)
                + bm * bn * 4)             # fp32 accumulator scratch
        if need <= vmem_budget:
            return bm, need
    return candidates[-1], need


def _in_spec(shape, index_map, *, grid_invariant, single_buffer):
    if grid_invariant and single_buffer and _HAS_BUFFERED:
        # Grid-invariant operand: double-buffering buys nothing -> halve its VMEM footprint.
        return pl.BlockSpec(shape, index_map, pipeline_mode=pl.Buffered(1))
    return pl.BlockSpec(shape, index_map)


# ------------------------------ forward wrapper --------------------------------

def fully_connected(x, params, *, activation="relu", out_dtype=None,
                    vmem_budget=_DEFAULT_VMEM_BUDGET):
    """activation(x @ W^T + b). `params` comes from prepare_params()."""
    if activation == "relu":
        use_relu = True
    elif activation in (None, "none", "identity", "linear"):
        use_relu = False
    else:
        raise ValueError(f"Unsupported activation: {activation!r}")

    orig_shape = x.shape
    if orig_shape[-1] != params.in_features:
        raise ValueError(f"x last dim {orig_shape[-1]} != in_features {params.in_features}")

    wt, bias = params.wt, params.bias
    k_pad, n_pad = wt.shape
    out_features = params.out_features
    out_dtype = np.dtype(out_dtype) if out_dtype is not None else np.dtype(x.dtype)

    x2 = x.reshape(-1, orig_shape[-1])        # DMA'd in its incoming dtype (no fp32 round trip)
    m = x2.shape[0]

    bk = _feature_tile(k_pad)
    bn = _feature_tile(n_pad)
    bm, vmem_need = _pick_block_m(m, bk, bn, x2.dtype.itemsize, wt.dtype.itemsize,
                                  out_dtype.itemsize, vmem_budget)

    m_pad = _round_up(m, bm)
    pad_m = m_pad - m
    pad_k = k_pad - x2.shape[1]
    if pad_m or pad_k:
        x2 = jnp.pad(x2, ((0, pad_m), (0, pad_k)))   # zero padding: exact no-op rows / K terms

    mt, nt, kt = m_pad // bm, n_pad // bn, k_pad // bk

    if kt == 1:
        kernel = functools.partial(_fc_kernel_fused, use_relu)
        scratch_shapes = []
    else:
        kernel = functools.partial(_fc_kernel_acc, use_relu)
        scratch_shapes = [pltpu.VMEM((bm, bn), jnp.float32)]

    cost = pl.CostEstimate(
        flops=2 * m_pad * k_pad * n_pad,
        transcendentals=0,
        bytes_accessed=int(x2.size * x2.dtype.itemsize + wt.size * wt.dtype.itemsize
                           + bias.size * bias.dtype.itemsize
                           + m_pad * n_pad * out_dtype.itemsize),
    )
    compiler_params = pltpu.CompilerParams(
        dimension_semantics=("parallel", "parallel", "arbitrary"),
        vmem_limit_bytes=int(min(max(vmem_need * 5 // 4, 32 * _MiB), 60 * _MiB)),
    )

    def _run(single_buffer):
        in_specs = [
            pl.BlockSpec((bm, bk), lambda i, j, k: (i, k)),                     # x tile
            _in_spec((bk, bn), lambda i, j, k: (k, j),
                     grid_invariant=(nt == 1 and kt == 1),
                     single_buffer=single_buffer),                              # W^T
            _in_spec((1, bn), lambda i, j, k: (0, j),
                     grid_invariant=(nt == 1), single_buffer=single_buffer),    # bias
        ]
        return pl.pallas_call(
            kernel,
            out_shape=jax.ShapeDtypeStruct((m_pad, n_pad), out_dtype),
            grid=(mt, nt, kt),
            in_specs=in_specs,
            out_specs=pl.BlockSpec((bm, bn), lambda i, j, k: (i, j)),
            scratch_shapes=scratch_shapes,
            compiler_params=compiler_params,
            cost_estimate=cost,
        )(x2, wt, bias)

    if _HAS_BUFFERED and nt == 1:            # only then is anything grid-invariant
        try:
            out = _run(single_buffer=True)
        except Exception:                    # JAX version without Buffered(1) support
            out = _run(single_buffer=False)
    else:
        out = _run(single_buffer=False)

    if pad_m or n_pad != out_features:
        out = out[:m, :out_features]
    return out.reshape(*orig_shape[:-1], out_features)


# ----------------------------- pure-JAX reference -----------------------------

def reference(x, weight, bias, activation="relu"):
    out = jnp.dot(x, weight.T) + bias
    if activation == "relu":
        out = jnp.maximum(out, 0.0)
    return out


# ------------------------------------ main ------------------------------------

if __name__ == "__main__":
    batch, seq, in_features, out_features = 4, 16, 96, 128

    key = jax.random.PRNGKey(0)
    kx, kw = jax.random.split(key)
    x = jax.random.normal(kx, (batch, seq, in_features), jnp.float32)
    weight, bias = init_params(kw, in_features, out_features)

    # One-time parameter prep (transpose + bf16 cast + pad), hoisted out of the call path.
    params = prepare_params(weight, bias, use_bf16=True)

    out = jax.block_until_ready(fully_connected(x, params, activation="relu"))
    ref = jax.block_until_ready(reference(x, weight, bias, activation="relu"))

    assert out.shape == ref.shape, (out.shape, ref.shape)
    # bf16 MXU operands with fp32 accumulation -> loosened tolerance (error ~ sqrt(K)).
    np.testing.assert_allclose(np.asarray(out), np.asarray(ref), rtol=2e-2, atol=2e-2)

    print("KERNEL_OK")
</pallas_src>

<mosaic_0001>
module attributes {stable_mosaic.version = 11 : i64} {
  func.func @_fc_kernel_fused(%arg0: i32, %arg1: i32, %arg2: i32, %arg3: memref<64x96xf32, #tpu.memory_space<vmem>>, %arg4: memref<96x128xbf16, #tpu.memory_space<vmem>>, %arg5: memref<1x128xf32, #tpu.memory_space<vmem>>, %arg6: memref<64x128xf32, #tpu.memory_space<vmem>>) attributes {dimension_semantics = [#tpu.dimension_semantics<parallel>, #tpu.dimension_semantics<parallel>, #tpu.dimension_semantics<arbitrary>], iteration_bounds = array<i64: 1, 1, 1>, scalar_prefetch = 0 : i64, scratch_operands = 0 : i64, tpu.core_type = #tpu.core_type<tc>, window_params = [{transform_indices = @transform_0, window_bounds = array<i64: 64, 96>}, {pipeline_mode = #tpu.pipeline_mode<synchronous>, transform_indices = @transform_1, window_bounds = array<i64: 96, 128>}, {pipeline_mode = #tpu.pipeline_mode<synchronous>, transform_indices = @transform_2, window_bounds = array<i64: 1, 128>}, {transform_indices = @transform_3, window_bounds = array<i64: 64, 128>}]} {
    %c0 = arith.constant 0 : index
    %c0_0 = arith.constant 0 : index
    %0 = vector.load %arg3[%c0, %c0_0] : memref<64x96xf32, #tpu.memory_space<vmem>>, vector<64x96xf32>
    %1 = arith.truncf %0 : vector<64x96xf32> to vector<64x96xbf16>
    %c0_1 = arith.constant 0 : index
    %c0_2 = arith.constant 0 : index
    %2 = vector.load %arg4[%c0_1, %c0_2] : memref<96x128xbf16, #tpu.memory_space<vmem>>, vector<96x128xbf16>
    %cst = arith.constant dense<0.000000e+00> : vector<64x128xf32>
    %3 = tpu.matmul %1, %2, %cst {dimension_numbers = #tpu.dot_dimension_numbers<[1], [0], [0], [1], [0, 0, 1, 1], [], []>} : vector<64x96xbf16>, vector<96x128xbf16>, vector<64x128xf32> -> vector<64x128xf32>
    %c0_3 = arith.constant 0 : index
    %c0_4 = arith.constant 0 : index
    %4 = vector.load %arg5[%c0_3, %c0_4] : memref<1x128xf32, #tpu.memory_space<vmem>>, vector<1x128xf32>
    %5 = vector.broadcast %4 : vector<1x128xf32> to vector<64x128xf32>
    %6 = arith.addf %3, %5 : vector<64x128xf32>
    %cst_5 = arith.constant 0.000000e+00 : f32
    %7 = vector.broadcast %cst_5 : f32 to vector<64x128xf32>
    %8 = arith.maximumf %6, %7 : vector<64x128xf32>
    %c0_6 = arith.constant 0 : index
    %c0_7 = arith.constant 0 : index
    %9 = vector.load %arg6[%c0_6, %c0_7] : memref<64x128xf32, #tpu.memory_space<vmem>>, vector<64x128xf32>
    tpu.vector_store %arg6[%c0_6, %c0_7], %8 {strides = array<i32>} : memref<64x128xf32, #tpu.memory_space<vmem>>, vector<64x128xf32>,
    return
  }
  func.func @transform_0(%arg0: i32, %arg1: i32, %arg2: i32) -> (i32, i32) {
    %c0_i32 = arith.constant 0 : i32
    return %arg0, %arg2 : i32, i32
  }
  func.func @transform_1(%arg0: i32, %arg1: i32, %arg2: i32) -> (i32, i32) {
    %c0_i32 = arith.constant 0 : i32
    return %arg2, %arg1 : i32, i32
  }
  func.func @transform_2(%arg0: i32, %arg1: i32, %arg2: i32) -> (i32, i32) {
    %c0_i32 = arith.constant 0 : i32
    %c0_i32_0 = arith.constant 0 : i32
    return %c0_i32, %arg1 : i32, i32
  }
  func.func @transform_3(%arg0: i32, %arg1: i32, %arg2: i32) -> (i32, i32) {
    %c0_i32 = arith.constant 0 : i32
    return %arg0, %arg1 : i32, i32
  }
}

module attributes {stable_mosaic.version = 11 : i64} {
  func.func @_fc_kernel_fused(%arg0: i32, %arg1: i32, %arg2: i32, %arg3: memref<64x96xf32, #tpu.memory_space<vmem>>, %arg4: memref<96x128xbf16, #tpu.memory_space<vmem>>, %arg5: memref<1x128xf32, #tpu.memory_space<vmem>>, %arg6: memref<64x128xf32, #tpu.memory_space<vmem>>) attributes {dimension_semantics = [#tpu.dimension_semantics<parallel>, #tpu.dimension_semantics<parallel>, #tpu.dimension_semantics<arbitrary>], iteration_bounds = array<i64: 1, 1, 1>, scalar_prefetch = 0 : i64, scratch_operands = 0 : i64, tpu.core_type = #tpu.core_type<tc>, window_params = [{transform_indices = @transform_0, window_bounds = array<i64: 64, 96>}, {transform_indices = @transform_1, window_bounds = array<i64: 96, 128>}, {transform_indices = @transform_2, window_bounds = array<i64: 1, 128>}, {transform_indices = @transform_3, window_bounds = array<i64: 64, 128>}]} {
    %c0 = arith.constant 0 : index
    %c0_0 = arith.constant 0 : index
    %0 = vector.load %arg3[%c0, %c0_0] : memref<64x96xf32, #tpu.memory_space<vmem>>, vector<64x96xf32>
    %1 = arith.truncf %0 : vector<64x96xf32> to vector<64x96xbf16>
    %c0_1 = arith.constant 0 : index
    %c0_2 = arith.constant 0 : index
    %2 = vector.load %arg4[%c0_1, %c0_2] : memref<96x128xbf16, #tpu.memory_space<vmem>>, vector<96x128xbf16>
    %cst = arith.constant dense<0.000000e+00> : vector<64x128xf32>
    %3 = tpu.matmul %1, %2, %cst {dimension_numbers = #tpu.dot_dimension_numbers<[1], [0], [0], [1], [0, 0, 1, 1], [], []>} : vector<64x96xbf16>, vector<96x128xbf16>, vector<64x128xf32> -> vector<64x128xf32>
    %c0_3 = arith.constant 0 : index
    %c0_4 = arith.constant 0 : index
    %4 = vector.load %arg5[%c0_3, %c0_4] : memref<1x128xf32, #tpu.memory_space<vmem>>, vector<1x128xf32>
    %5 = vector.broadcast %4 : vector<1x128xf32> to vector<64x128xf32>
    %6 = arith.addf %3, %5 : vector<64x128xf32>
    %cst_5 = arith.constant 0.000000e+00 : f32
    %7 = vector.broadcast %cst_5 : f32 to vector<64x128xf32>
    %8 = arith.maximumf %6, %7 : vector<64x128xf32>
    %c0_6 = arith.constant 0 : index
    %c0_7 = arith.constant 0 : index
    %9 = vector.load %arg6[%c0_6, %c0_7] : memref<64x128xf32, #tpu.memory_space<vmem>>, vector<64x128xf32>
    tpu.vector_store %arg6[%c0_6, %c0_7], %8 {strides = array<i32>} : memref<64x128xf32, #tpu.memory_space<vmem>>, vector<64x128xf32>,
    return
  }
  func.func @transform_0(%arg0: i32, %arg1: i32, %arg2: i32) -> (i32, i32) {
    %c0_i32 = arith.constant 0 : i32
    return %arg0, %arg2 : i32, i32
  }
  func.func @transform_1(%arg0: i32, %arg1: i32, %arg2: i32) -> (i32, i32) {
    %c0_i32 = arith.constant 0 : i32
    return %arg2, %arg1 : i32, i32
  }
  func.func @transform_2(%arg0: i32, %arg1: i32, %arg2: i32) -> (i32, i32) {
    %c0_i32 = arith.constant 0 : i32
    %c0_i32_0 = arith.constant 0 : i32
    return %c0_i32, %arg1 : i32, i32
  }
  func.func @transform_3(%arg0: i32, %arg1: i32, %arg2: i32) -> (i32, i32) {
    %c0_i32 = arith.constant 0 : i32
    return %arg0, %arg1 : i32, i32
  }
}

</mosaic_0001>

<llo_original>
// kernel: tpu_custom_call.1
$region0: #{tpu_custom_call.1}
  #allocation0 [shape = 'u32[]', space=smem, size = 0x4, offset = 0x4, fixed_abs, tag = 'smem constant byte address 0x4 - core index']
  #allocation1 [shape = 'u32[144,128]{1,0:T(1,128)}', space=vmem, size = 0x12000, scoped, tag = 'internal scratch']
  %s0 = inlined_call_operand.hbm [shape: f32[64,96], index: 0, kind: input, shape index: {}]
  %s1 = inlined_call_operand.hbm [shape: bf16[96,128], index: 1, kind: input, shape index: {}]
  %s2 = inlined_call_operand.vmem [shape: f32[1,128], index: 2, kind: input, shape index: {}]
  %s3 = inlined_call_operand.hbm [shape: f32[64,128], index: 3, kind: output, shape index: {}]
  %s4 = sld [smem:[#allocation0]]
  $region30: #{tpu_custom_call.1} parent=0
    _
  %s6 = ssub.s32 1, %s4
  %s7 = scalar_select 0, %s6, %s4
  $region1: #{tpu_custom_call.1} parent=0
    #allocation2 [shape = 'u8[32768]{0}', space=vmem, size = 0x8000, scoped, tag = 'input window, operand 0, single buffered']
    #allocation3 [shape = 's32[1]{0}', space=sflag, size = 0x4, scoped, tag = 'scoped memory for tpu_custom_call.1']
    #allocation4 [shape = 's32[1]{0}', space=sflag, size = 0x4, scoped, tag = 'scoped memory for tpu_custom_call.1']
    #allocation5 [shape = 'u8[24576]{0}', space=vmem, size = 0x6000, scoped, tag = 'input window, operand 1, single buffered']
    #allocation6 [shape = 's32[1]{0}', space=sflag, size = 0x4, scoped, tag = 'scoped memory for tpu_custom_call.1']
    #allocation7 [shape = 'u8[32768]{0}', space=vmem, size = 0x8000, scoped, tag = 'output window, operand 0, single buffered']
    %8 = vsyncpa [#allocation3], 0
    %9 = vsyncpa [#allocation6], 0
    %10 = vsyncpa [#allocation4], 0
    // Predicated region
    $region2: #{tpu_custom_call.1} parent=1 // pred_check
      _
    $region3: #{tpu_custom_call.1} parent=1 // pred_check_branch
      %12 = sbr.rel (0) target = $region5
    $region4: #{tpu_custom_call.1} parent=1 // pred_region
      %s14 = ssub.s32 1024, 1024
      %15 = vsyncadd [#allocation3], %s14
      %s16 = sshll.u32 [#allocation2], 4
      %s17 = int_to_ptr.vmem [resolvable:$true] %s16
      %22 = dma.hbm_to_vmem [thread:$0]  %s0, 1024, %s17, [#allocation3], 128, 128, 8
    $region5: #{tpu_custom_call.1} parent=1 // pred_fallthru
      _
    // Predicated region
    $region6: #{tpu_custom_call.1} parent=1 // pred_check
      _
    $region7: #{tpu_custom_call.1} parent=1 // pred_check_branch
      %24 = sbr.rel (0) target = $region9
    $region8: #{tpu_custom_call.1} parent=1 // pred_region
      %s26 = ssub.s32 768, 768
      %27 = vsyncadd [#allocation6], %s26
      %s28 = sshll.u32 [#allocation5], 4
      %s29 = int_to_ptr.vmem [resolvable:$true] %s28
      %34 = dma.hbm_to_vmem [thread:$0]  %s1, 768, %s29, [#allocation6], 64, 64, 4
    $region9: #{tpu_custom_call.1} parent=1 // pred_fallthru
      _
    // Predicated region
    $region10: #{tpu_custom_call.1} parent=1 // pred_check
      _
    $region11: #{tpu_custom_call.1} parent=1 // pred_check_branch
      %36 = sbr.rel (0) target = $region13
    $region12: #{tpu_custom_call.1} parent=1 // pred_region
      _
    $region13: #{tpu_custom_call.1} parent=1 // pred_fallthru
      _
    // Predicated region
    $region14: #{tpu_custom_call.1} parent=1 // pred_check
      _
    $region15: #{tpu_custom_call.1} parent=1 // pred_check_branch
      %38 = sbr.rel (0) target = $region17
    $region16: #{tpu_custom_call.1} parent=1 // pred_region
      %39 = dma.done [#allocation3], 1024
    $region17: #{tpu_custom_call.1} parent=1 // pred_fallthru
      _
    // Predicated region
    $region18: #{tpu_custom_call.1} parent=1 // pred_check
      _
    $region19: #{tpu_custom_call.1} parent=1 // pred_check_branch
      %41 = sbr.rel (0) target = $region21
    $region20: #{tpu_custom_call.1} parent=1 // pred_region
      %42 = dma.done [#allocation6], 768
    $region21: #{tpu_custom_call.1} parent=1 // pred_fallthru
      _
    %v44 = vld [vmem:[#allocation2] sm:$0xff]
    %v45 = vld [vmem:[#allocation2 + $0x8] sm:$0xff]
    %v46 = vld [vmem:[#allocation2 + $0x10] sm:$0xff]
    %v47 = vld [vmem:[#allocation2 + $0x18] sm:$0xff]
    %v48 = vld [vmem:[#allocation2 + $0x20] sm:$0xff]
    %v49 = vld [vmem:[#allocation2 + $0x28] sm:$0xff]
    %v50 = vld [vmem:[#allocation2 + $0x30] sm:$0xff]
    %v51 = vld [vmem:[#allocation2 + $0x38] sm:$0xff]
    %v52 = vpack.c.bf16 %v45, %v44
    %v53 = vpack.c.bf16 %v47, %v46
    %v54 = vpack.c.bf16 %v49, %v48
    %v55 = vpack.c.bf16 %v51, %v50
    %v56 = vld [vmem:[#allocation5] sm:$0xf]
    %v57 = vld [vmem:[#allocation5 + $0x4] sm:$0xf]
    %v58 = vld [vmem:[#allocation5 + $0x8] sm:$0xf]
    %v59 = vld [vmem:[#allocation5 + $0xc] sm:$0xf]
    %v60 = vld [vmem:[#allocation5 + $0x10] sm:$0xf]
    %v61 = vld [vmem:[#allocation5 + $0x14] sm:$0xf]
    %v62 = vld [vmem:[#allocation5 + $0x18] sm:$0xf]
    %v63 = vld [vmem:[#allocation5 + $0x1c] sm:$0xf]
    %v64 = vld [vmem:[#allocation5 + $0x20] sm:$0xf]
    %v65 = vld [vmem:[#allocation5 + $0x24] sm:$0xf]
    %v66 = vld [vmem:[#allocation5 + $0x28] sm:$0xf]
    %v67 = vld [vmem:[#allocation5 + $0x2c] sm:$0xf]
    %v68 = vld [vmem:[%s2] sm:$0x1]
    %v70 = vlaneseq
    %v71 = vshrl.u32 %v70, 7
    %v72 = vsub.s32 0, %v71
    %v73 = vrot.slane %v68, %v72
    %v87 = vunpack.c.l.b16 %v56
    %v88 = vunpack.c.l.b16 %v57
    %v89 = vunpack.c.l.b16 %v58
    %v90 = vunpack.c.l.b16 %v59
    %v91 = vunpack.c.l.b16 %v60
    %v92 = vunpack.c.l.b16 %v61
    %v93 = vunpack.c.l.b16 %v62
    %v94 = vunpack.c.l.b16 %v63
    %v95 = vunpack.c.l.b16 %v64
    %v96 = vunpack.c.l.b16 %v65
    %v97 = vunpack.c.l.b16 %v66
    %v98 = vunpack.c.l.b16 %v67
    %v99 = vpack.c.b16 %v88, %v87
    %v100 = vpack.c.b16 %v90, %v89
    %v101 = vpack.c.b16 %v92, %v91
    %v102 = vpack.c.b16 %v94, %v93
    %v103 = vpack.c.b16 %v96, %v95
    %v104 = vpack.c.b16 %v98, %v97
    %vm111 = vcmask 785408
    %v113 = vsel %vm111, %v52, 0
    %v116 = vsel %vm111, %v53, 0
    %v119 = vsel %vm111, %v54, 0
    %v122 = vsel %vm111, %v55, 0
    %124 = vmatprep.subr.bf16.mxu0 0
    %125 = vmatpush1.bf16.msra.mxu0 %v99
    %126 = vmatprep.subr.bf16.mxu0 0
    %127 = vmatpush1.bf16.msra.mxu0 %v100
    %128 = vmatprep.subr.bf16.mxu0 0
    %129 = vmatpush1.bf16.msra.mxu0 %v101
    %130 = vmatprep.subr.bf16.mxu0 0
    %131 = vmatpush1.bf16.msra.mxu0 %v102
    %132 = vmatprep.subr.bf16.mxu0 0
    %133 = vmatpush1.bf16.msra.mxu0 %v103
    %134 = vmatprep.subr.bf16.mxu0 0
    %135 = vmatpush1.bf16.msra.mxu0 %v104
    %136 = vmatprep.subr.bf16.mxu0 0
    %137 = vmatpush1.bf16.msra.mxu0 0
    %138 = vmatprep.subr.bf16.mxu0 0
    %139 = vmatpush1.bf16.msra.mxu0 0
    %140 = vmatprep.subr.bf16.mxu0 0
    %141 = vmatpush1.bf16.msra.mxu0 0
    %142 = vmatprep.subr.bf16.mxu0 0
    %143 = vmatpush1.bf16.msra.mxu0 0
    %144 = vmatprep.subr.bf16.mxu0 0
    %145 = vmatpush1.bf16.msra.mxu0 0
    %146 = vmatprep.subr.bf16.mxu0 0
    %147 = vmatpush1.bf16.msra.mxu0 0
    %148 = vmatprep.subr.bf16.mxu0 0
    %149 = vmatpush1.bf16.msra.mxu0 0
    %150 = vmatprep.subr.bf16.mxu0 0
    %151 = vmatpush1.bf16.msra.mxu0 0
    %152 = vmatprep.subr.bf16.mxu0 0
    %153 = vmatpush1.bf16.msra.mxu0 0
    %154 = vmatprep.subr.bf16.mxu0 0
    %155 = vmatpush1.bf16.msra.mxu0 0
    %156 = vmatprep.mubr.bf16.mxu0 0
    %157 = vmatmul.mubr.bf16.gmra.mrb[0].mxu0 %v113
    %v158 = vpop.f32.mrb[0].mxu0
    %v159 = vadd.f32 %v73, %v158
    %v160 = vpop.f32.mrb[0].mxu0
    %v161 = vpop.f32.mrb[0].mxu0
    %v162 = vadd.f32 %v73, %v161
    %v163 = vpop.f32.mrb[0].mxu0
    %164 = vmatprep.mubr.bf16.mxu0 0
    %165 = vmatmul.mubr.bf16.gmra.mrb[0].mxu0 %v116
    %v166 = vpop.f32.mrb[0].mxu0
    %v167 = vadd.f32 %v73, %v166
    %v168 = vpop.f32.mrb[0].mxu0
    %v169 = vpop.f32.mrb[0].mxu0
    %v170 = vadd.f32 %v73, %v169
    %v171 = vpop.f32.mrb[0].mxu0
    %172 = vmatprep.mubr.bf16.mxu0 0
    %173 = vmatmul.mubr.bf16.gmra.mrb[0].mxu0 %v119
    %v174 = vpop.f32.mrb[0].mxu0
    %v175 = vadd.f32 %v73, %v174
    %v176 = vpop.f32.mrb[0].mxu0
    %v177 = vpop.f32.mrb[0].mxu0
    %v178 = vadd.f32 %v73, %v177
    %v179 = vpop.f32.mrb[0].mxu0
    %180 = vmatprep.mubr.bf16.mxu0 0
    %181 = vmatmul.mubr.bf16.gmra.mrb[0].mxu0 %v122
    %v182 = vpop.f32.mrb[0].mxu0
    %v183 = vadd.f32 %v73, %v182
    %v184 = vpop.f32.mrb[0].mxu0
    %v185 = vpop.f32.mrb[0].mxu0
    %v186 = vadd.f32 %v73, %v185
    %v187 = vpop.f32.mrb[0].mxu0
    %188 = vdwg.mxu0
    %v189 = vmax.f32 %v159, 0.0
    %v190 = vmax.f32 %v162, 0.0
    %v191 = vmax.f32 %v167, 0.0
    %v192 = vmax.f32 %v170, 0.0
    %v193 = vmax.f32 %v175, 0.0
    %v194 = vmax.f32 %v178, 0.0
    %v195 = vmax.f32 %v183, 0.0
    %v196 = vmax.f32 %v186, 0.0
    %197 = vst [vmem:[#allocation7] sm:$0xff] %v189
    %198 = vst [vmem:[#allocation7 + $0x8] sm:$0xff] %v190
    %199 = vst [vmem:[#allocation7 + $0x10] sm:$0xff] %v191
    %200 = vst [vmem:[#allocation7 + $0x18] sm:$0xff] %v192
    %201 = vst [vmem:[#allocation7 + $0x20] sm:$0xff] %v193
    %202 = vst [vmem:[#allocation7 + $0x28] sm:$0xff] %v194
    %203 = vst [vmem:[#allocation7 + $0x30] sm:$0xff] %v195
    %204 = vst [vmem:[#allocation7 + $0x38] sm:$0xff] %v196
    // Predicated region
    $region22: #{tpu_custom_call.1} parent=1 // pred_check
      _
    $region23: #{tpu_custom_call.1} parent=1 // pred_check_branch
      %206 = sbr.rel (0) target = $region25
    $region24: #{tpu_custom_call.1} parent=1 // pred_region
      %s208 = ssub.s32 1024, 1024
      %209 = vsyncadd [#allocation4], %s208
      %s210 = sshll.u32 [#allocation7], 4
      %s211 = int_to_ptr.vmem [resolvable:$true] %s210
      %216 = dma.vmem_to_hbm [thread:$0]  %s211, 1024, %s3, [#allocation4], 128, 128, 8
    $region25: #{tpu_custom_call.1} parent=1 // pred_fallthru
      _
    // Predicated region
    $region26: #{tpu_custom_call.1} parent=1 // pred_check
      _
    $region27: #{tpu_custom_call.1} parent=1 // pred_check_branch
      %218 = sbr.rel (0) target = $region29
    $region28: #{tpu_custom_call.1} parent=1 // pred_region
      %219 = dma.done [#allocation4], 1024
    $region29: #{tpu_custom_call.1} parent=1 // pred_fallthru
      _
    %220 = vsyncpa [#allocation3], 1
    %221 = vsyncpa [#allocation6], 1
    %222 = vsyncpa [#allocation4], 1

// kernel: tpu_custom_call.1
$region0: #{tpu_custom_call.1}
  #allocation0 [shape = 'u32[]', space=smem, size = 0x4, offset = 0x4, fixed_abs, tag = 'smem constant byte address 0x4 - core index']
  #allocation1 [shape = 'u32[144,128]{1,0:T(1,128)}', space=vmem, size = 0x12000, scoped, tag = 'internal scratch']
  %s0 = inlined_call_operand.hbm [shape: f32[64,96], index: 0, kind: input, shape index: {}]
  %s1 = inlined_call_operand.hbm [shape: bf16[96,128], index: 1, kind: input, shape index: {}]
  %s2 = inlined_call_operand.vmem [shape: f32[1,128], index: 2, kind: input, shape index: {}]
  %s3 = inlined_call_operand.hbm [shape: f32[64,128], index: 3, kind: output, shape index: {}]
  %s4 = sld [smem:[#allocation0]]
  $region30: #{tpu_custom_call.1} parent=0
    _
  %s6 = ssub.s32 1, %s4
  %s7 = scalar_select 0, %s6, %s4
  $region1: #{tpu_custom_call.1} parent=0
    #allocation2 [shape = 'u8[32768]{0}', space=vmem, size = 0x8000, scoped, tag = 'input window, operand 0, single buffered']
    #allocation3 [shape = 's32[1]{0}', space=sflag, size = 0x4, scoped, tag = 'scoped memory for tpu_custom_call.1']
    #allocation4 [shape = 's32[1]{0}', space=sflag, size = 0x4, scoped, tag = 'scoped memory for tpu_custom_call.1']
    #allocation5 [shape = 'u8[24576]{0}', space=vmem, size = 0x6000, scoped, tag = 'input window, operand 1, single buffered']
    #allocation6 [shape = 's32[1]{0}', space=sflag, size = 0x4, scoped, tag = 'scoped memory for tpu_custom_call.1']
    #allocation7 [shape = 'u8[32768]{0}', space=vmem, size = 0x8000, scoped, tag = 'output window, operand 0, single buffered']
    %8 = vsyncpa [#allocation3], 0
    %9 = vsyncpa [#allocation6], 0
    %10 = vsyncpa [#allocation4], 0
    // Predicated region
    $region2: #{tpu_custom_call.1} parent=1 // pred_check
      _
    $region3: #{tpu_custom_call.1} parent=1 // pred_check_branch
      %12 = sbr.rel (0) target = $region5
    $region4: #{tpu_custom_call.1} parent=1 // pred_region
      %s14 = ssub.s32 1024, 1024
      %15 = vsyncadd [#allocation3], %s14
      %s16 = sshll.u32 [#allocation2], 4
      %s17 = int_to_ptr.vmem [resolvable:$true] %s16
      %22 = dma.hbm_to_vmem [thread:$0]  %s0, 1024, %s17, [#allocation3], 128, 128, 8
    $region5: #{tpu_custom_call.1} parent=1 // pred_fallthru
      _
    // Predicated region
    $region6: #{tpu_custom_call.1} parent=1 // pred_check
      _
    $region7: #{tpu_custom_call.1} parent=1 // pred_check_branch
      %24 = sbr.rel (0) target = $region9
    $region8: #{tpu_custom_call.1} parent=1 // pred_region
      %s26 = ssub.s32 768, 768
      %27 = vsyncadd [#allocation6], %s26
      %s28 = sshll.u32 [#allocation5], 4
      %s29 = int_to_ptr.vmem [resolvable:$true] %s28
      %34 = dma.hbm_to_vmem [thread:$0]  %s1, 768, %s29, [#allocation6], 64, 64, 4
    $region9: #{tpu_custom_call.1} parent=1 // pred_fallthru
      _
    // Predicated region
    $region10: #{tpu_custom_call.1} parent=1 // pred_check
      _
    $region11: #{tpu_custom_call.1} parent=1 // pred_check_branch
      %36 = sbr.rel (0) target = $region13
    $region12: #{tpu_custom_call.1} parent=1 // pred_region
      _
    $region13: #{tpu_custom_call.1} parent=1 // pred_fallthru
      _
    // Predicated region
    $region14: #{tpu_custom_call.1} parent=1 // pred_check
      _
    $region15: #{tpu_custom_call.1} parent=1 // pred_check_branch
      %38 = sbr.rel (0) target = $region17
    $region16: #{tpu_custom_call.1} parent=1 // pred_region
      %39 = dma.done [#allocation3], 1024
    $region17: #{tpu_custom_call.1} parent=1 // pred_fallthru
      _
    // Predicated region
    $region18: #{tpu_custom_call.1} parent=1 // pred_check
      _
    $region19: #{tpu_custom_call.1} parent=1 // pred_check_branch
      %41 = sbr.rel (0) target = $region21
    $region20: #{tpu_custom_call.1} parent=1 // pred_region
      %42 = dma.done [#allocation6], 768
    $region21: #{tpu_custom_call.1} parent=1 // pred_fallthru
      _
    %v44 = vld [vmem:[#allocation2] sm:$0xff]
    %v45 = vld [vmem:[#allocation2 + $0x8] sm:$0xff]
    %v46 = vld [vmem:[#allocation2 + $0x10] sm:$0xff]
    %v47 = vld [vmem:[#allocation2 + $0x18] sm:$0xff]
    %v48 = vld [vmem:[#allocation2 + $0x20] sm:$0xff]
    %v49 = vld [vmem:[#allocation2 + $0x28] sm:$0xff]
    %v50 = vld [vmem:[#allocation2 + $0x30] sm:$0xff]
    %v51 = vld [vmem:[#allocation2 + $0x38] sm:$0xff]
    %v52 = vpack.c.bf16 %v45, %v44
    %v53 = vpack.c.bf16 %v47, %v46
    %v54 = vpack.c.bf16 %v49, %v48
    %v55 = vpack.c.bf16 %v51, %v50
    %v56 = vld [vmem:[#allocation5] sm:$0xf]
    %v57 = vld [vmem:[#allocation5 + $0x4] sm:$0xf]
    %v58 = vld [vmem:[#allocation5 + $0x8] sm:$0xf]
    %v59 = vld [vmem:[#allocation5 + $0xc] sm:$0xf]
    %v60 = vld [vmem:[#allocation5 + $0x10] sm:$0xf]
    %v61 = vld [vmem:[#allocation5 + $0x14] sm:$0xf]
    %v62 = vld [vmem:[#allocation5 + $0x18] sm:$0xf]
    %v63 = vld [vmem:[#allocation5 + $0x1c] sm:$0xf]
    %v64 = vld [vmem:[#allocation5 + $0x20] sm:$0xf]
    %v65 = vld [vmem:[#allocation5 + $0x24] sm:$0xf]
    %v66 = vld [vmem:[#allocation5 + $0x28] sm:$0xf]
    %v67 = vld [vmem:[#allocation5 + $0x2c] sm:$0xf]
    %v68 = vld [vmem:[%s2] sm:$0x1]
    %v70 = vlaneseq
    %v71 = vshrl.u32 %v70, 7
    %v72 = vsub.s32 0, %v71
    %v73 = vrot.slane %v68, %v72
    %v87 = vunpack.c.l.b16 %v56
    %v88 = vunpack.c.l.b16 %v57
    %v89 = vunpack.c.l.b16 %v58
    %v90 = vunpack.c.l.b16 %v59
    %v91 = vunpack.c.l.b16 %v60
    %v92 = vunpack.c.l.b16 %v61
    %v93 = vunpack.c.l.b16 %v62
    %v94 = vunpack.c.l.b16 %v63
    %v95 = vunpack.c.l.b16 %v64
    %v96 = vunpack.c.l.b16 %v65
    %v97 = vunpack.c.l.b16 %v66
    %v98 = vunpack.c.l.b16 %v67
    %v99 = vpack.c.b16 %v88, %v87
    %v100 = vpack.c.b16 %v90, %v89
    %v101 = vpack.c.b16 %v92, %v91
    %v102 = vpack.c.b16 %v94, %v93
    %v103 = vpack.c.b16 %v96, %v95
    %v104 = vpack.c.b16 %v98, %v97
    %vm111 = vcmask 785408
    %v113 = vsel %vm111, %v52, 0
    %v116 = vsel %vm111, %v53, 0
    %v119 = vsel %vm111, %v54, 0
    %v122 = vsel %vm111, %v55, 0
    %124 = vmatprep.subr.bf16.mxu0 0
    %125 = vmatpush1.bf16.msra.mxu0 %v99
    %126 = vmatprep.subr.bf16.mxu0 0
    %127 = vmatpush1.bf16.msra.mxu0 %v100
    %128 = vmatprep.subr.bf16.mxu0 0
    %129 = vmatpush1.bf16.msra.mxu0 %v101
    %130 = vmatprep.subr.bf16.mxu0 0
    %131 = vmatpush1.bf16.msra.mxu0 %v102
    %132 = vmatprep.subr.bf16.mxu0 0
    %133 = vmatpush1.bf16.msra.mxu0 %v103
    %134 = vmatprep.subr.bf16.mxu0 0
    %135 = vmatpush1.bf16.msra.mxu0 %v104
    %136 = vmatprep.subr.bf16.mxu0 0
    %137 = vmatpush1.bf16.msra.mxu0 0
    %138 = vmatprep.subr.bf16.mxu0 0
    %139 = vmatpush1.bf16.msra.mxu0 0
    %140 = vmatprep.subr.bf16.mxu0 0
    %141 = vmatpush1.bf16.msra.mxu0 0
    %142 = vmatprep.subr.bf16.mxu0 0
    %143 = vmatpush1.bf16.msra.mxu0 0
    %144 = vmatprep.subr.bf16.mxu0 0
    %145 = vmatpush1.bf16.msra.mxu0 0
    %146 = vmatprep.subr.bf16.mxu0 0
    %147 = vmatpush1.bf16.msra.mxu0 0
    %148 = vmatprep.subr.bf16.mxu0 0
    %149 = vmatpush1.bf16.msra.mxu0 0
    %150 = vmatprep.subr.bf16.mxu0 0
    %151 = vmatpush1.bf16.msra.mxu0 0
    %152 = vmatprep.subr.bf16.mxu0 0
    %153 = vmatpush1.bf16.msra.mxu0 0
    %154 = vmatprep.subr.bf16.mxu0 0
    %155 = vmatpush1.bf16.msra.mxu0 0
    %156 = vmatprep.mubr.bf16.mxu0 0
    %157 = vmatmul.mubr.bf16.gmra.mrb[0].mxu0 %v113
    %v158 = vpop.f32.mrb[0].mxu0
    %v159 = vadd.f32 %v73, %v158
    %v160 = vpop.f32.mrb[0].mxu0
    %v161 = vpop.f32.mrb[0].mxu0
    %v162 = vadd.f32 %v73, %v161
    %v163 = vpop.f32.mrb[0].mxu0
    %164 = vmatprep.mubr.bf16.mxu0 0
    %165 = vmatmul.mubr.bf16.gmra.mrb[0].mxu0 %v116
    %v166 = vpop.f32.mrb[0].mxu0
    %v167 = vadd.f32 %v73, %v166
    %v168 = vpop.f32.mrb[0].mxu0
    %v169 = vpop.f32.mrb[0].mxu0
    %v170 = vadd.f32 %v73, %v169
    %v171 = vpop.f32.mrb[0].mxu0
    %172 = vmatprep.mubr.bf16.mxu0 0
    %173 = vmatmul.mubr.bf16.gmra.mrb[0].mxu0 %v119
    %v174 = vpop.f32.mrb[0].mxu0
    %v175 = vadd.f32 %v73, %v174
    %v176 = vpop.f32.mrb[0].mxu0
    %v177 = vpop.f32.mrb[0].mxu0
    %v178 = vadd.f32 %v73, %v177
    %v179 = vpop.f32.mrb[0].mxu0
    %180 = vmatprep.mubr.bf16.mxu0 0
    %181 = vmatmul.mubr.bf16.gmra.mrb[0].mxu0 %v122
    %v182 = vpop.f32.mrb[0].mxu0
    %v183 = vadd.f32 %v73, %v182
    %v184 = vpop.f32.mrb[0].mxu0
    %v185 = vpop.f32.mrb[0].mxu0
    %v186 = vadd.f32 %v73, %v185
    %v187 = vpop.f32.mrb[0].mxu0
    %188 = vdwg.mxu0
    %v189 = vmax.f32 %v159, 0.0
    %v190 = vmax.f32 %v162, 0.0
    %v191 = vmax.f32 %v167, 0.0
    %v192 = vmax.f32 %v170, 0.0
    %v193 = vmax.f32 %v175, 0.0
    %v194 = vmax.f32 %v178, 0.0
    %v195 = vmax.f32 %v183, 0.0
    %v196 = vmax.f32 %v186, 0.0
    %197 = vst [vmem:[#allocation7] sm:$0xff] %v189
    %198 = vst [vmem:[#allocation7 + $0x8] sm:$0xff] %v190
    %199 = vst [vmem:[#allocation7 + $0x10] sm:$0xff] %v191
    %200 = vst [vmem:[#allocation7 + $0x18] sm:$0xff] %v192
    %201 = vst [vmem:[#allocation7 + $0x20] sm:$0xff] %v193
    %202 = vst [vmem:[#allocation7 + $0x28] sm:$0xff] %v194
    %203 = vst [vmem:[#allocation7 + $0x30] sm:$0xff] %v195
    %204 = vst [vmem:[#allocation7 + $0x38] sm:$0xff] %v196
    // Predicated region
    $region22: #{tpu_custom_call.1} parent=1 // pred_check
      _
    $region23: #{tpu_custom_call.1} parent=1 // pred_check_branch
      %206 = sbr.rel (0) target = $region25
    $region24: #{tpu_custom_call.1} parent=1 // pred_region
      %s208 = ssub.s32 1024, 1024
      %209 = vsyncadd [#allocation4], %s208
      %s210 = sshll.u32 [#allocation7], 4
      %s211 = int_to_ptr.vmem [resolvable:$true] %s210
      %216 = dma.vmem_to_hbm [thread:$0]  %s211, 1024, %s3, [#allocation4], 128, 128, 8
    $region25: #{tpu_custom_call.1} parent=1 // pred_fallthru
      _
    // Predicated region
    $region26: #{tpu_custom_call.1} parent=1 // pred_check
      _
    $region27: #{tpu_custom_call.1} parent=1 // pred_check_branch
      %218 = sbr.rel (0) target = $region29
    $region28: #{tpu_custom_call.1} parent=1 // pred_region
      %219 = dma.done [#allocation4], 1024
    $region29: #{tpu_custom_call.1} parent=1 // pred_fallthru
      _
    %220 = vsyncpa [#allocation3], 1
    %221 = vsyncpa [#allocation6], 1
    %222 = vsyncpa [#allocation4], 1

</llo_original>
